<compile_context>
chip_gen: v5e
topology: v5e:2x2
jax: 0.10.0
libtpu: 0.0.40
codegen_flags: <defaults>
</compile_context>

<pallas_src>
import jax
import jax.numpy as jnp
from jax.experimental import pallas as pl
from jax.experimental.pallas import tpu as pltpu


def fusion_kernel(h_ref, d_ref, w1_ref, b1_ref, w2_ref, o_ref):
    h = h_ref[...].astype(jnp.float32)      # (tn, D)
    d = d_ref[...].astype(jnp.float32)      # (tn, D)
    w1 = w1_ref[...]                        # (D, D)   (x @ w1 form)
    b1 = b1_ref[...]                        # (1, D)
    w2 = w2_ref[...]                        # (1, D)   (linear2 weight as a row)

    tn = h.shape[0]

    # One fused MXU matmul for both branches: stack along the sublane axis.
    x = jnp.concatenate([h, d], axis=0)                                 # (2*tn, D)
    t = jnp.tanh(jnp.dot(x, w1, preferred_element_type=jnp.float32) + b1)

    # Score difference via VPU multiply + lane reduction (avoids a width-1
    # MXU matmul).  b2 is omitted: softmax over the 2 branches is
    # shift-invariant, so it has no effect on the output.
    diff = jnp.sum((t[:tn] - t[tn:]) * w2, axis=-1, keepdims=True)      # (tn, 1)

    # softmax([sh, sd], axis=0)[0] == sigmoid(sh - sd)
    a_h = 1.0 / (1.0 + jnp.exp(-diff))                                  # (tn, 1)

    # a_h*h + (1-a_h)*d == d + a_h*(h-d)
    # TODO(synk): nn.Dropout(0.2) is identity in eval mode; not applied here.
    o_ref[...] = (d + a_h * (h - d)).astype(o_ref.dtype)


def fusion_forward(hidden, dy_emb, w1, b1, w2, b2=None, *, tile_n=None):
    """hidden, dy_emb: (N, D).  w1: (D, D) so that x @ w1 == linear1(x) - b1.
    b1: (1, D).  w2: (1, D) (linear2 weight row) or (D, 1).  b2 unused
    (cancels in the 2-way softmax)."""
    N, D = hidden.shape
    w2_row = jnp.asarray(w2).reshape(1, D)
    b1 = jnp.asarray(b1).reshape(1, D)

    if tile_n is None:
        # Whole problem in one step when small; 512-row lane-contiguous tiles
        # otherwise (keeps >=2 grid steps for megacore sharding on v7x).
        tile_n = N if N <= 512 else 512
        while N % tile_n != 0:
            tile_n //= 2
    assert N % tile_n == 0
    grid = (N // tile_n,)

    return pl.pallas_call(
        fusion_kernel,
        out_shape=jax.ShapeDtypeStruct((N, D), hidden.dtype),
        grid=grid,
        in_specs=[
            pl.BlockSpec((tile_n, D), lambda i: (i, 0)),   # hidden tile
            pl.BlockSpec((tile_n, D), lambda i: (i, 0)),   # dy_emb tile
            pl.BlockSpec((D, D), lambda i: (0, 0)),        # W1 (resident)
            pl.BlockSpec((1, D), lambda i: (0, 0)),        # b1
            pl.BlockSpec((1, D), lambda i: (0, 0)),        # W2 row
        ],
        out_specs=pl.BlockSpec((tile_n, D), lambda i: (i, 0)),
        compiler_params=pltpu.CompilerParams(
            dimension_semantics=("parallel",)),
    )(hidden, dy_emb, w1, b1, w2_row)


def fusion_reference(hidden, dy_emb, w1, b1, w2_row, b2):
    emb = jnp.stack([hidden, dy_emb], axis=0)                              # (2, N, D)
    s = jnp.sum(jnp.tanh(jnp.dot(emb, w1) + b1) * w2_row,
                axis=-1, keepdims=True) + b2                               # (2, N, 1)
    score = jax.nn.softmax(s, axis=0)
    return jnp.sum(score * emb, axis=0)


if __name__ == "__main__":
    N, D = 16, 32   # seq=16 tokens, input_size=32
    key = jax.random.PRNGKey(0)
    k_h, k_d, k_w1, k_b1, k_w2, k_b2 = jax.random.split(key, 6)

    hidden = jax.random.normal(k_h, (N, D), dtype=jnp.float32)
    dy_emb = jax.random.normal(k_d, (N, D), dtype=jnp.float32)

    # Deterministic parameter init mirroring the module:
    #   linear1.weight : xavier_normal_, shape (D, D)  -> std = sqrt(2/(D+D))
    #   linear2.weight : xavier_normal_, shape (1, D)  -> std = sqrt(2/(D+1))
    # linear1 weight stored transposed so the kernel computes x @ W^T directly;
    # linear2 weight stored as its natural (1, D) row.
    std1 = (2.0 / (D + D)) ** 0.5
    std2 = (2.0 / (D + 1)) ** 0.5
    w1 = jax.random.normal(k_w1, (D, D), dtype=jnp.float32) * std1    # (D_in, D_out)
    b1 = jax.random.uniform(k_b1, (1, D), dtype=jnp.float32,
                            minval=-1.0 / D ** 0.5, maxval=1.0 / D ** 0.5)
    w2 = jax.random.normal(k_w2, (1, D), dtype=jnp.float32) * std2    # (1, D) row
    b2 = jax.random.uniform(k_b2, (1, 1), dtype=jnp.float32,
                            minval=-1.0 / D ** 0.5, maxval=1.0 / D ** 0.5)

    out = fusion_forward(hidden, dy_emb, w1, b1, w2, b2)
    out = jax.block_until_ready(out)

    ref = fusion_reference(hidden, dy_emb, w1, b1, w2, b2)
    assert out.shape == (N, D)
    assert jnp.allclose(out, ref, atol=1e-5, rtol=1e-5)

    print("KERNEL_OK")
</pallas_src>

<mosaic_0001>
module attributes {stable_mosaic.version = 11 : i64} {
  func.func @fusion_kernel(%arg0: i32, %arg1: memref<16x32xf32, #tpu.memory_space<vmem>>, %arg2: memref<16x32xf32, #tpu.memory_space<vmem>>, %arg3: memref<32x32xf32, #tpu.memory_space<vmem>>, %arg4: memref<1x32xf32, #tpu.memory_space<vmem>>, %arg5: memref<1x32xf32, #tpu.memory_space<vmem>>, %arg6: memref<16x32xf32, #tpu.memory_space<vmem>>) attributes {dimension_semantics = [#tpu.dimension_semantics<parallel>], iteration_bounds = array<i64: 1>, scalar_prefetch = 0 : i64, scratch_operands = 0 : i64, tpu.core_type = #tpu.core_type<tc>, window_params = [{transform_indices = @transform_0, window_bounds = array<i64: 16, 32>}, {transform_indices = @transform_1, window_bounds = array<i64: 16, 32>}, {pipeline_mode = #tpu.pipeline_mode<synchronous>, transform_indices = @transform_2, window_bounds = array<i64: 32, 32>}, {pipeline_mode = #tpu.pipeline_mode<synchronous>, transform_indices = @transform_3, window_bounds = array<i64: 1, 32>}, {pipeline_mode = #tpu.pipeline_mode<synchronous>, transform_indices = @transform_4, window_bounds = array<i64: 1, 32>}, {transform_indices = @transform_5, window_bounds = array<i64: 16, 32>}]} {
    %c0 = arith.constant 0 : index
    %c0_0 = arith.constant 0 : index
    %0 = vector.load %arg1[%c0, %c0_0] : memref<16x32xf32, #tpu.memory_space<vmem>>, vector<16x32xf32>
    %c0_1 = arith.constant 0 : index
    %c0_2 = arith.constant 0 : index
    %1 = vector.load %arg2[%c0_1, %c0_2] : memref<16x32xf32, #tpu.memory_space<vmem>>, vector<16x32xf32>
    %c0_3 = arith.constant 0 : index
    %c0_4 = arith.constant 0 : index
    %2 = vector.load %arg3[%c0_3, %c0_4] : memref<32x32xf32, #tpu.memory_space<vmem>>, vector<32x32xf32>
    %c0_5 = arith.constant 0 : index
    %c0_6 = arith.constant 0 : index
    %3 = vector.load %arg4[%c0_5, %c0_6] : memref<1x32xf32, #tpu.memory_space<vmem>>, vector<1x32xf32>
    %c0_7 = arith.constant 0 : index
    %c0_8 = arith.constant 0 : index
    %4 = vector.load %arg5[%c0_7, %c0_8] : memref<1x32xf32, #tpu.memory_space<vmem>>, vector<1x32xf32>
    %5 = tpu.concatenate %0, %1 in 0 : vector<16x32xf32>, vector<16x32xf32> -> vector<32x32xf32>
    %cst = arith.constant dense<0.000000e+00> : vector<32x32xf32>
    %6 = tpu.matmul %5, %2, %cst {dimension_numbers = #tpu.dot_dimension_numbers<[1], [0], [0], [1], [0, 0, 1, 1], [], []>} : vector<32x32xf32>, vector<32x32xf32>, vector<32x32xf32> -> vector<32x32xf32>
    %7 = vector.broadcast %3 : vector<1x32xf32> to vector<32x32xf32>
    %8 = arith.addf %6, %7 : vector<32x32xf32>
    %9 = math.tanh %8 : vector<32x32xf32>
    %10 = vector.extract_strided_slice %9 {offsets = [0, 0], sizes = [16, 32], strides = [1, 1]} : vector<32x32xf32> to vector<16x32xf32>
    %11 = vector.extract_strided_slice %9 {offsets = [16, 0], sizes = [16, 32], strides = [1, 1]} : vector<32x32xf32> to vector<16x32xf32>
    %12 = arith.subf %10, %11 : vector<16x32xf32>
    %13 = vector.broadcast %4 : vector<1x32xf32> to vector<16x32xf32>
    %14 = arith.mulf %12, %13 : vector<16x32xf32>
    %cst_9 = arith.constant dense<0.000000e+00> : vector<16xf32>
    %15 = vector.multi_reduction <add>, %14, %cst_9 [1] : vector<16x32xf32> to vector<16xf32>
    %16 = vector.shape_cast %15 : vector<16xf32> to vector<16x1xf32>
    %cst_10 = arith.constant 0.000000e+00 : f32
    %17 = vector.broadcast %cst_10 : f32 to vector<16x1xf32>
    %18 = arith.subf %17, %16 : vector<16x1xf32>
    %19 = math.exp %18 : vector<16x1xf32>
    %cst_11 = arith.constant 1.000000e+00 : f32
    %20 = vector.broadcast %cst_11 : f32 to vector<16x1xf32>
    %21 = arith.addf %20, %19 : vector<16x1xf32>
    %cst_12 = arith.constant 1.000000e+00 : f32
    %22 = vector.broadcast %cst_12 : f32 to vector<16x1xf32>
    %23 = arith.divf %22, %21 : vector<16x1xf32>
    %24 = arith.subf %0, %1 : vector<16x32xf32>
    %25 = vector.broadcast %23 : vector<16x1xf32> to vector<16x32xf32>
    %26 = arith.mulf %25, %24 : vector<16x32xf32>
    %27 = arith.addf %1, %26 : vector<16x32xf32>
    %c0_13 = arith.constant 0 : index
    %c0_14 = arith.constant 0 : index
    %28 = vector.load %arg6[%c0_13, %c0_14] : memref<16x32xf32, #tpu.memory_space<vmem>>, vector<16x32xf32>
    tpu.vector_store %arg6[%c0_13, %c0_14], %27 {strides = array<i32>} : memref<16x32xf32, #tpu.memory_space<vmem>>, vector<16x32xf32>,
    return
  }
  func.func @transform_0(%arg0: i32) -> (i32, i32) {
    %c0_i32 = arith.constant 0 : i32
    %c0_i32_0 = arith.constant 0 : i32
    return %arg0, %c0_i32 : i32, i32
  }
  func.func @transform_1(%arg0: i32) -> (i32, i32) {
    %c0_i32 = arith.constant 0 : i32
    %c0_i32_0 = arith.constant 0 : i32
    return %arg0, %c0_i32 : i32, i32
  }
  func.func @transform_2(%arg0: i32) -> (i32, i32) {
    %c0_i32 = arith.constant 0 : i32
    %c0_i32_0 = arith.constant 0 : i32
    %c0_i32_1 = arith.constant 0 : i32
    return %c0_i32, %c0_i32_0 : i32, i32
  }
  func.func @transform_3(%arg0: i32) -> (i32, i32) {
    %c0_i32 = arith.constant 0 : i32
    %c0_i32_0 = arith.constant 0 : i32
    %c0_i32_1 = arith.constant 0 : i32
    return %c0_i32, %c0_i32_0 : i32, i32
  }
  func.func @transform_4(%arg0: i32) -> (i32, i32) {
    %c0_i32 = arith.constant 0 : i32
    %c0_i32_0 = arith.constant 0 : i32
    %c0_i32_1 = arith.constant 0 : i32
    return %c0_i32, %c0_i32_0 : i32, i32
  }
  func.func @transform_5(%arg0: i32) -> (i32, i32) {
    %c0_i32 = arith.constant 0 : i32
    %c0_i32_0 = arith.constant 0 : i32
    return %arg0, %c0_i32 : i32, i32
  }
}

</mosaic_0001>

<llo_original>
// kernel: tpu_custom_call.1
$region0: #{tpu_custom_call.1}
  #allocation0 [shape = 'u32[]', space=smem, size = 0x4, offset = 0x4, fixed_abs, tag = 'smem constant byte address 0x4 - core index']
  #allocation1 [shape = 'u32[72,128]{1,0:T(1,128)}', space=vmem, size = 0x9000, scoped, tag = 'internal scratch']
  %s0 = inlined_call_operand.hbm [shape: f32[16,32], index: 0, kind: input, shape index: {}]
  %s1 = inlined_call_operand.hbm [shape: f32[16,32], index: 1, kind: input, shape index: {}]
  %s2 = inlined_call_operand.hbm [shape: f32[32,32], index: 2, kind: input, shape index: {}]
  %s3 = inlined_call_operand.vmem [shape: f32[1,32], index: 3, kind: input, shape index: {}]
  %s4 = inlined_call_operand.vmem [shape: f32[1,32], index: 4, kind: input, shape index: {}]
  %s5 = inlined_call_operand.hbm [shape: f32[16,32], index: 5, kind: output, shape index: {}]
  %s6 = sld [smem:[#allocation0]]
  $region42: #{tpu_custom_call.1} parent=0
    _
  %s8 = ssub.s32 1, %s6
  %s9 = scalar_select 0, %s8, %s6
  $region1: #{tpu_custom_call.1} parent=0
    #allocation2 [shape = 'u8[8192]{0}', space=vmem, size = 0x2000, scoped, tag = 'input window, operand 0, single buffered']
    #allocation3 [shape = 's32[1]{0}', space=sflag, size = 0x4, scoped, tag = 'scoped memory for tpu_custom_call.1']
    #allocation4 [shape = 's32[1]{0}', space=sflag, size = 0x4, scoped, tag = 'scoped memory for tpu_custom_call.1']
    #allocation5 [shape = 'u8[8192]{0}', space=vmem, size = 0x2000, scoped, tag = 'input window, operand 1, single buffered']
    #allocation6 [shape = 's32[1]{0}', space=sflag, size = 0x4, scoped, tag = 'scoped memory for tpu_custom_call.1']
    #allocation7 [shape = 'u8[16384]{0}', space=vmem, size = 0x4000, scoped, tag = 'input window, operand 2, single buffered']
    #allocation8 [shape = 'u8[8192]{0}', space=vmem, size = 0x2000, scoped, tag = 'output window, operand 0, single buffered']
    %10 = vsyncpa [#allocation3], 0
    %11 = vsyncpa [#allocation6], 0
    %12 = vsyncpa [#allocation4], 0
    // Predicated region
    $region2: #{tpu_custom_call.1} parent=1 // pred_check
      _
    $region3: #{tpu_custom_call.1} parent=1 // pred_check_branch
      %14 = sbr.rel (0) target = $region5
    $region4: #{tpu_custom_call.1} parent=1 // pred_region
      %16 = vsyncadd [#allocation3], 0
      %s17 = sshll.u32 %s0, 4
      %s18 = int_to_ptr.hbm [resolvable:$true] %s17
      %s19 = sshll.u32 [#allocation2], 4
      %s20 = int_to_ptr.vmem [resolvable:$true] %s19
      %25 = dma.hbm_to_vmem [thread:$0]  %s18, 256, %s20, [#allocation3], 128, 128, 8
    $region5: #{tpu_custom_call.1} parent=1 // pred_fallthru
      _
    // Predicated region
    $region6: #{tpu_custom_call.1} parent=1 // pred_check
      _
    $region7: #{tpu_custom_call.1} parent=1 // pred_check_branch
      %27 = sbr.rel (0) target = $region9
    $region8: #{tpu_custom_call.1} parent=1 // pred_region
      %29 = vsyncadd [#allocation6], 0
      %s30 = sshll.u32 %s1, 4
      %s31 = int_to_ptr.hbm [resolvable:$true] %s30
      %s32 = sshll.u32 [#allocation5], 4
      %s33 = int_to_ptr.vmem [resolvable:$true] %s32
      %38 = dma.hbm_to_vmem [thread:$0]  %s31, 256, %s33, [#allocation6], 128, 128, 8
    $region9: #{tpu_custom_call.1} parent=1 // pred_fallthru
      _
    // Predicated region
    $region10: #{tpu_custom_call.1} parent=1 // pred_check
      _
    $region11: #{tpu_custom_call.1} parent=1 // pred_check_branch
      %40 = sbr.rel (0) target = $region13
    $region12: #{tpu_custom_call.1} parent=1 // pred_region
      %42 = vsyncadd [#allocation6], 0
      %s43 = sshll.u32 %s2, 4
      %s44 = int_to_ptr.hbm [resolvable:$true] %s43
      %s45 = sshll.u32 [#allocation7], 4
      %s46 = int_to_ptr.vmem [resolvable:$true] %s45
      %51 = dma.hbm_to_vmem [thread:$0]  %s44, 512, %s46, [#allocation6], 128, 128, 8
    $region13: #{tpu_custom_call.1} parent=1 // pred_fallthru
      _
    // Predicated region
    $region14: #{tpu_custom_call.1} parent=1 // pred_check
      _
    $region15: #{tpu_custom_call.1} parent=1 // pred_check_branch
      %53 = sbr.rel (0) target = $region17
    $region16: #{tpu_custom_call.1} parent=1 // pred_region
      _
    $region17: #{tpu_custom_call.1} parent=1 // pred_fallthru
      _
    // Predicated region
    $region18: #{tpu_custom_call.1} parent=1 // pred_check
      _
    $region19: #{tpu_custom_call.1} parent=1 // pred_check_branch
      %55 = sbr.rel (0) target = $region21
    $region20: #{tpu_custom_call.1} parent=1 // pred_region
      _
    $region21: #{tpu_custom_call.1} parent=1 // pred_fallthru
      _
    // Predicated region
    $region22: #{tpu_custom_call.1} parent=1 // pred_check
      _
    $region23: #{tpu_custom_call.1} parent=1 // pred_check_branch
      %57 = sbr.rel (0) target = $region25
    $region24: #{tpu_custom_call.1} parent=1 // pred_region
      %59 = dma.done [#allocation3], 256
    $region25: #{tpu_custom_call.1} parent=1 // pred_fallthru
      _
    // Predicated region
    $region26: #{tpu_custom_call.1} parent=1 // pred_check
      _
    $region27: #{tpu_custom_call.1} parent=1 // pred_check_branch
      %61 = sbr.rel (0) target = $region29
    $region28: #{tpu_custom_call.1} parent=1 // pred_region
      %63 = dma.done [#allocation6], 256
    $region29: #{tpu_custom_call.1} parent=1 // pred_fallthru
      _
    // Predicated region
    $region30: #{tpu_custom_call.1} parent=1 // pred_check
      _
    $region31: #{tpu_custom_call.1} parent=1 // pred_check_branch
      %65 = sbr.rel (0) target = $region33
    $region32: #{tpu_custom_call.1} parent=1 // pred_region
      %67 = dma.done [#allocation6], 512
    $region33: #{tpu_custom_call.1} parent=1 // pred_fallthru
      _
    %v68 = vld [vmem:[#allocation2] sm:$0xff]
    %v69 = vld [vmem:[#allocation2 + $0x8] sm:$0xff]
    %v70 = vld [vmem:[#allocation5] sm:$0xff]
    %v71 = vld [vmem:[#allocation5 + $0x8] sm:$0xff]
    %v72 = vld [vmem:[#allocation7] sm:$0xff]
    %v73 = vld [vmem:[#allocation7 + $0x8] sm:$0xff]
    %v74 = vld [vmem:[#allocation7 + $0x10] sm:$0xff]
    %v75 = vld [vmem:[#allocation7 + $0x18] sm:$0xff]
    %v76 = vld [vmem:[%s3] sm:$0x1]
    %v77 = vld [vmem:[%s4] sm:$0x1]
    %v79 = vperm.slane %v76, 0
    %vm81 = vcmask 261120
    %v83 = vsel %vm81, %v68, 0
    %v86 = vsel %vm81, %v69, 0
    %v89 = vsel %vm81, %v70, 0
    %v92 = vsel %vm81, %v71, 0
    %94 = vmatpush.msra.mxu0 0.0
    %95 = vmatpush.msra.mxu0 0.0
    %96 = vmatpush.msra.mxu0 0.0
    %97 = vmatpush.msra.mxu0 0.0
    %98 = vmatpush.msra.mxu0 0.0
    %99 = vmatpush.msra.mxu0 0.0
    %100 = vmatpush.msra.mxu0 0.0
    %101 = vmatpush.msra.mxu0 0.0
    %102 = vmatpush.msra.mxu0 0.0
    %103 = vmatpush.msra.mxu0 0.0
    %104 = vmatpush.msra.mxu0 0.0
    %105 = vmatpush.msra.mxu0 0.0
    %106 = vmatpush.msra.mxu0 %v75
    %107 = vmatpush.msra.mxu0 %v74
    %108 = vmatpush.msra.mxu0 %v73
    %109 = vmatpush.msra.mxu0 %v72
    %110 = vmatmul.f32.gmra.mxu0 %v83
    %v111 = vpop.f32.mrf.mxu0
    %v112 = vadd.f32 %v79, %v111
    %113 = vmatmul.f32.gmra.mxu0 %v86
    %v114 = vpop.f32.mrf.mxu0
    %v115 = vadd.f32 %v79, %v114
    %116 = vmatmul.f32.gmra.mxu0 %v89
    %v117 = vpop.f32.mrf.mxu0
    %v118 = vadd.f32 %v79, %v117
    %119 = vmatmul.f32.gmra.mxu0 %v92
    %v120 = vpop.f32.mrf.mxu0
    %v121 = vadd.f32 %v79, %v120
    %122 = vdwg.mxu0
    %v123 = vtanh.pop %v112
    %v124 = vtanh.pop %v115
    %v125 = vtanh.pop %v118
    %v126 = vtanh.pop %v121
    %v127 = vsub.f32 %v123, %v125
    %v128 = vsub.f32 %v124, %v126
    %v130 = vperm.slane %v77, 0
    %v132 = vmul.f32 %v127, %v130
    %v133 = vmul.f32 %v128, %v130
    %v134 = vsel %vm81, %v132, 0.0
    %135 = vadd.xlane.f32.xlu0 %v134
    %v136 = vpop.xlane.xlu0 %135
    %v137 = vsel %vm81, %v133, 0.0
    %138 = vadd.xlane.f32.xlu0 %v137
    %v139 = vpop.xlane.xlu0 %138
    %v140 = vsub.f32 0.0, %v136
    %v141 = vsub.f32 0.0, %v139
    %v142 = vmul.f32 %v140, 1.442695
    %v143 = vpow.pop %v142
    %v144 = vmul.f32 %v141, 1.442695
    %v145 = vpow.pop %v144
    %v146 = vadd.f32 %v143, 1.0
    %v147 = vadd.f32 %v145, 1.0
    %v148 = vrcp.pop %v146
    %v149 = vmul.f32 %v146, %v148
    %v150 = vsub.f32 1.0, %v149
    %v151 = vmul.f32 %v148, %v150
    %v152 = vadd.f32 %v148, %v151
    %vm153 = vweird.f32 %v146
    %vm154 = vweird.f32 %v148
    %vm155 = vmor %vm153, %vm154
    %v156 = vsel %vm155, %v148, %v152
    %v157 = vand.u32 2147483647, %v146
    %vm158 = vcmp.eq.f32.partialorder %v157, 8.507059e+37
    %v159 = vand.u32 %v146, 2147483648
    %v160 = vor.u32 1.1754944e-38, %v159
    %v161 = vsel %vm158, %v160, %v156
    %v162 = vmul.f32 1.0, %v161
    %v163 = vrcp.pop %v147
    %v164 = vmul.f32 %v147, %v163
    %v165 = vsub.f32 1.0, %v164
    %v166 = vmul.f32 %v163, %v165
    %v167 = vadd.f32 %v163, %v166
    %vm168 = vweird.f32 %v147
    %vm169 = vweird.f32 %v163
    %vm170 = vmor %vm168, %vm169
    %v171 = vsel %vm170, %v163, %v167
    %v172 = vand.u32 2147483647, %v147
    %vm173 = vcmp.eq.f32.partialorder %v172, 8.507059e+37
    %v174 = vand.u32 %v147, 2147483648
    %v175 = vor.u32 1.1754944e-38, %v174
    %v176 = vsel %vm173, %v175, %v171
    %v177 = vmul.f32 1.0, %v176
    %v178 = vsub.f32 %v68, %v70
    %v179 = vsub.f32 %v69, %v71
    %v180 = vmul.f32 %v162, %v178
    %v181 = vmul.f32 %v177, %v179
    %v182 = vadd.f32 %v70, %v180
    %v183 = vadd.f32 %v71, %v181
    %184 = vst.msk [vmem:[#allocation8] sm:$0xff] %vm81, %v182
    %185 = vst.msk [vmem:[#allocation8 + $0x8] sm:$0xff] %vm81, %v183
    // Predicated region
    $region34: #{tpu_custom_call.1} parent=1 // pred_check
      _
    $region35: #{tpu_custom_call.1} parent=1 // pred_check_branch
      %187 = sbr.rel (0) target = $region37
    $region36: #{tpu_custom_call.1} parent=1 // pred_region
      %189 = vsyncadd [#allocation4], 0
      %s190 = sshll.u32 [#allocation8], 4
      %s191 = int_to_ptr.vmem [resolvable:$true] %s190
      %s192 = sshll.u32 %s5, 4
      %s193 = int_to_ptr.hbm [resolvable:$true] %s192
      %198 = dma.vmem_to_hbm [thread:$0]  %s191, 256, %s193, [#allocation4], 128, 128, 8
    $region37: #{tpu_custom_call.1} parent=1 // pred_fallthru
      _
    // Predicated region
    $region38: #{tpu_custom_call.1} parent=1 // pred_check
      _
    $region39: #{tpu_custom_call.1} parent=1 // pred_check_branch
      %200 = sbr.rel (0) target = $region41
    $region40: #{tpu_custom_call.1} parent=1 // pred_region
      %202 = dma.done [#allocation4], 256
    $region41: #{tpu_custom_call.1} parent=1 // pred_fallthru
      _
    %203 = vsyncpa [#allocation3], 1
    %204 = vsyncpa [#allocation6], 1
    %205 = vsyncpa [#allocation4], 1

</llo_original>
